<compile_context>
chip_gen: v7x
topology: tpu7x:2x2x1
jax: 0.10.0
libtpu: 0.0.40
codegen_flags: <defaults>
</compile_context>

<pallas_src>
import functools

import jax
import jax.numpy as jnp
import numpy as np
from jax import lax
from jax.experimental import pallas as pl
from jax.experimental.pallas import tpu as pltpu


def _round_up(x, m):
    return (x + m - 1) // m * m


# ---------------------------------------------------------------------------
# Kernel 1: pointwise FFN + LayerNorm over a row-tile of atoms (steps 2-4).
#   xf_ref : [TM, fdim_p]    bf16  original atom features (zero-padded lanes)
#   xa_ref : [TM, hid_p]     bf16  neighbor-aggregated embedding
#   w1f/w1a/w2 : bf16 resident weights (lane-padded), b*/gamma/beta : f32 rows
# The first Linear of PositionwiseFeedForward is computed as a split stacked-K
# matmul so the wrapper never materializes the concat([f_atoms, aggr]) copy.
# ---------------------------------------------------------------------------
def atom_ffn_ln_kernel(xf_ref, xa_ref, w1f_ref, w1a_ref, b1_ref,
                       w2_ref, b2_ref, gamma_ref, beta_ref, out_ref,
                       *, true_hidden):
    h = jnp.dot(xf_ref[...], w1f_ref[...], preferred_element_type=jnp.float32)
    h = h + jnp.dot(xa_ref[...], w1a_ref[...], preferred_element_type=jnp.float32)
    h = jnp.maximum(h + b1_ref[...], 0.0)                     # Linear -> ReLU (f32)
    y = jnp.dot(h.astype(w2_ref.dtype), w2_ref[...],
                preferred_element_type=jnp.float32) + b2_ref[...]
    # atom_from_atom_sublayer(None, y) == dropout(LayerNorm(y)) == LayerNorm(y).
    # Padded lanes of y are exactly 0 (zero-padded w2 columns / b2), so plain
    # sums divided by the TRUE hidden width give unbiased statistics.
    s1 = jnp.sum(y, axis=-1, keepdims=True)
    s2 = jnp.sum(y * y, axis=-1, keepdims=True)
    mu = s1 / true_hidden
    var = jnp.maximum(s2 / true_hidden - mu * mu, 0.0)
    yn = (y - mu) * lax.rsqrt(var + 1e-5)
    out_ref[...] = yn * gamma_ref[...] + beta_ref[...]


# ---------------------------------------------------------------------------
# Jitted implementation.  `single_buffer_weights` is static so the outer
# wrapper can fall back to default (double) buffering if pl.Buffered(1) is not
# supported by the installed JAX/Mosaic.
# ---------------------------------------------------------------------------
@functools.partial(jax.jit, static_argnames=("single_buffer_weights",))
def _node_view_readout_impl(atom_output, original_f_atoms, a2a,
                            a_starts, a_sizes, features_batch, params,
                            *, single_buffer_weights=True):
    n_atoms, hidden = atom_output.shape
    fdim = original_f_atoms.shape[1]
    n_mols = a_starts.shape[0]
    d_ff = params["w1"].shape[1]

    # ---- step 1 (XLA gather): neighbor aggregation, O(N * max_nbrs * H).
    aggr = jnp.take(atom_output, a2a, axis=0).sum(axis=1)       # [n_atoms, hidden]

    # ---- lane-dense padding of every kernel-1 operand dim to multiples of 128.
    fdim_p = _round_up(fdim, 128)
    hid_p = _round_up(hidden, 128)
    dff_p = _round_up(d_ff, 128)

    # ---- generation-aware VMEM budget.
    try:
        vmem_cap = int(pltpu.get_tpu_info().vmem_capacity_bytes)
    except Exception:                                            # pragma: no cover
        vmem_cap = 64 * 1024 * 1024                              # conservative (v7x / TC)
    budget = min(int(vmem_cap * 0.75), 100 * 1024 * 1024)

    n_weight_bufs = 1 if single_buffer_weights else 2
    resident = n_weight_bufs * (
        (fdim_p * dff_p + hid_p * dff_p + dff_p * hid_p) * 2     # bf16 weights
        + (dff_p + 3 * hid_p) * 4)                               # f32 biases / LN

    def tile_bytes(tm):
        streamed = 2 * tm * (fdim_p + hid_p) * 2                 # bf16 inputs, double-buffered
        streamed += 2 * tm * hid_p * 4                           # f32 output, double-buffered
        interm = tm * dff_p * 4 + 2 * tm * hid_p * 4             # f32 h + y/epilogue temps
        return streamed + interm

    tm = 512
    while tm > 16 and resident + tile_bytes(tm) > budget:
        tm //= 2
    tm = min(tm, _round_up(n_atoms, 16))                         # bf16 packs 16 rows/sublane tile
    n_pad = _round_up(n_atoms, tm)

    vmem_limit = int(min(max(resident + tile_bytes(tm) + (4 << 20), 16 << 20),
                         int(vmem_cap * 0.9)))

    # ---- zero-padded bf16 MXU operands (biases / LayerNorm params stay f32).
    xf = jnp.pad(original_f_atoms.astype(jnp.bfloat16),
                 ((0, n_pad - n_atoms), (0, fdim_p - fdim)))
    xa = jnp.pad(aggr.astype(jnp.bfloat16),
                 ((0, n_pad - n_atoms), (0, hid_p - hidden)))
    w1f = jnp.pad(params["w1"][:fdim].astype(jnp.bfloat16),
                  ((0, fdim_p - fdim), (0, dff_p - d_ff)))
    w1a = jnp.pad(params["w1"][fdim:].astype(jnp.bfloat16),
                  ((0, hid_p - hidden), (0, dff_p - d_ff)))
    b1 = jnp.pad(params["b1"], ((0, 0), (0, dff_p - d_ff)))
    w2 = jnp.pad(params["w2"].astype(jnp.bfloat16),
                 ((0, dff_p - d_ff), (0, hid_p - hidden)))
    b2 = jnp.pad(params["b2"], ((0, 0), (0, hid_p - hidden)))
    gamma = jnp.pad(params["ln_gamma"], ((0, 0), (0, hid_p - hidden)))
    beta = jnp.pad(params["ln_beta"], ((0, 0), (0, hid_p - hidden)))

    def const_spec(shape):
        idx = lambda i: (0,) * len(shape)
        if single_buffer_weights:
            # resident operand: one buffer, index_map never changes
            return pl.BlockSpec(shape, idx, pipeline_mode=pl.Buffered(1))
        return pl.BlockSpec(shape, idx)

    flops = 2 * n_pad * (fdim_p * dff_p + hid_p * dff_p + dff_p * hid_p)
    bytes_accessed = int((xf.size + xa.size + w1f.size + w1a.size + w2.size) * 2
                         + (b1.size + b2.size + gamma.size + beta.size) * 4
                         + n_pad * hid_p * 4)
    cost = pl.CostEstimate(flops=flops, transcendentals=0,
                           bytes_accessed=bytes_accessed)

    atom_emb_p = pl.pallas_call(
        functools.partial(atom_ffn_ln_kernel, true_hidden=float(hidden)),
        out_shape=jax.ShapeDtypeStruct((n_pad, hid_p), jnp.float32),
        grid=(n_pad // tm,),
        in_specs=[
            pl.BlockSpec((tm, fdim_p), lambda i: (i, 0)),        # streamed atom rows
            pl.BlockSpec((tm, hid_p), lambda i: (i, 0)),         # streamed aggr rows
            const_spec((fdim_p, dff_p)),                         # resident weights
            const_spec((hid_p, dff_p)),
            const_spec((1, dff_p)),
            const_spec((dff_p, hid_p)),
            const_spec((1, hid_p)),
            const_spec((1, hid_p)),
            const_spec((1, hid_p)),
        ],
        out_specs=pl.BlockSpec((tm, hid_p), lambda i: (i, 0)),
        compiler_params=pltpu.CompilerParams(
            dimension_semantics=("parallel",),                   # rows shard across TCs
            vmem_limit_bytes=vmem_limit),
        cost_estimate=cost,
    )(xf, xa, w1f, w1a, b1, w2, b2, gamma, beta)
    atom_emb = atom_emb_p[:n_atoms, :hidden]

    # ---- step 5 (XLA): per-molecule mean readout via device-side segment-sum.
    # Assumes a_starts ascending and contiguous per-molecule ranges (GROVER a_scope).
    atom_idx = jnp.arange(n_atoms, dtype=jnp.int32)
    mol_id = jnp.searchsorted(a_starts, atom_idx, side="right").astype(jnp.int32) - 1
    mol_id_c = jnp.clip(mol_id, 0, n_mols - 1)
    in_scope = (mol_id >= 0) & (atom_idx < a_starts[mol_id_c] + a_sizes[mol_id_c])
    seg = jnp.where(in_scope, mol_id_c, n_mols)                  # out-of-scope -> dropped
    mol_sum = jax.ops.segment_sum(atom_emb, seg, num_segments=n_mols + 1)[:n_mols]
    mol = mol_sum / a_sizes[:, None].astype(jnp.float32)

    # ---- steps 6-7 (XLA): molecule FFN head.  For a few hundred molecules the
    # compute is microseconds; a dedicated pallas_call was overhead-dominated.
    molx = jnp.concatenate([mol, features_batch], axis=1)
    h2 = jnp.maximum(molx @ params["w3"] + params["b3"], 0.0)
    out = jax.nn.sigmoid(h2 @ params["w4"] + params["b4"])
    return out, atom_emb


def node_view_readout_ffn(atom_output, original_f_atoms, a2a,
                          a_starts, a_sizes, features_batch, params):
    """Outer wrapper with a fallback if single-buffered weights are unsupported."""
    args = (atom_output, original_f_atoms, a2a, a_starts, a_sizes,
            features_batch, params)
    try:
        res = _node_view_readout_impl(*args, single_buffer_weights=True)
        return jax.block_until_ready(res)
    except Exception:
        res = _node_view_readout_impl(*args, single_buffer_weights=False)
        return jax.block_until_ready(res)


# ---------------------------------------------------------------------------
# Pure-JAX f32 reference (mirrors the PyTorch forward, eval mode)
# ---------------------------------------------------------------------------
def reference(atom_output, original_f_atoms, a2a, a_scope, features_batch, params):
    aggr = atom_output[a2a].sum(axis=1)
    x = jnp.concatenate([original_f_atoms, aggr], axis=1)
    h = jnp.maximum(x @ params["w1"] + params["b1"], 0.0)
    y = h @ params["w2"] + params["b2"]
    mu = y.mean(axis=-1, keepdims=True)
    var = ((y - mu) ** 2).mean(axis=-1, keepdims=True)
    atom_emb = (y - mu) / jnp.sqrt(var + 1e-5) * params["ln_gamma"] + params["ln_beta"]
    mols = jnp.stack([atom_emb[s:s + n].mean(axis=0) for (s, n) in a_scope])
    molx = jnp.concatenate([mols, features_batch], axis=1)
    h2 = jnp.maximum(molx @ params["w3"] + params["b3"], 0.0)
    out = jax.nn.sigmoid(h2 @ params["w4"] + params["b4"])
    return out, atom_emb


if __name__ == "__main__":
    # small shapes consistent with the module
    n_atoms, max_nbrs = 16, 4
    fdim = 24                       # original atom feature dim (node_fdim)
    hidden = 32                     # args.hidden_size
    d_ff = 4 * hidden               # GROVER PositionwiseFeedForward inner dim
    n_mols = 2
    features_dim = 8                # args.features_dim
    ffn_hidden = 32                 # args.ffn_hidden_size
    num_tasks = 3                   # args.output_size

    key = jax.random.PRNGKey(0)
    ks = jax.random.split(key, 10)

    atom_output = jax.random.normal(ks[0], (n_atoms, hidden), jnp.float32)
    original_f_atoms = jax.random.normal(ks[1], (n_atoms, fdim), jnp.float32)
    a2a = jax.random.randint(ks[2], (n_atoms, max_nbrs), 0, n_atoms)
    a_scope = [(0, 8), (8, 8)]      # (start, size) per molecule
    a_starts = jnp.asarray([s for s, _ in a_scope], jnp.int32)
    a_sizes = jnp.asarray([n for _, n in a_scope], jnp.int32)
    assert bool(jnp.all(a_starts[1:] >= a_starts[:-1])), "a_scope must be sorted"
    features_batch = jax.random.normal(ks[3], (n_mols, features_dim), jnp.float32)

    s = 0.1
    params = {
        # ffn_atom_from_atom: Linear(fdim+hidden, 4H) -> ReLU -> Linear(4H, H)
        "w1": s * jax.random.normal(ks[4], (fdim + hidden, d_ff), jnp.float32),
        "b1": s * jax.random.normal(ks[5], (1, d_ff), jnp.float32),
        "w2": s * jax.random.normal(ks[6], (d_ff, hidden), jnp.float32),
        "b2": s * jax.random.normal(ks[7], (1, hidden), jnp.float32),
        # atom_from_atom_sublayer LayerNorm
        "ln_gamma": jnp.ones((1, hidden), jnp.float32),
        "ln_beta": jnp.zeros((1, hidden), jnp.float32),
        # mol_atom_from_atom_ffn: Linear(H+features_dim, ffn_hidden) -> ReLU -> Linear(ffn_hidden, num_tasks)
        "w3": s * jax.random.normal(ks[8], (hidden + features_dim, ffn_hidden), jnp.float32),
        "b3": jnp.zeros((1, ffn_hidden), jnp.float32),
        "w4": s * jax.random.normal(ks[9], (ffn_hidden, num_tasks), jnp.float32),
        "b4": jnp.zeros((1, num_tasks), jnp.float32),
    }

    out, atom_emb = node_view_readout_ffn(
        atom_output, original_f_atoms, a2a, a_starts, a_sizes,
        features_batch, params)

    ref_out, ref_emb = reference(
        atom_output, original_f_atoms, a2a, a_scope, features_batch, params)

    # bf16 MXU operands with f32 accumulation -> validate with relaxed tolerance
    np.testing.assert_allclose(np.asarray(atom_emb), np.asarray(ref_emb),
                               rtol=5e-2, atol=5e-2)
    np.testing.assert_allclose(np.asarray(out), np.asarray(ref_out),
                               rtol=2e-2, atol=2e-2)

    print("KERNEL_OK")
</pallas_src>

<mosaic_0001>
module attributes {stable_mosaic.version = 11 : i64} {
  func.func @atom_ffn_ln_kernel(%arg0: i32, %arg1: memref<16x128xbf16, #tpu.memory_space<vmem>>, %arg2: memref<16x128xbf16, #tpu.memory_space<vmem>>, %arg3: memref<128x128xbf16, #tpu.memory_space<vmem>>, %arg4: memref<128x128xbf16, #tpu.memory_space<vmem>>, %arg5: memref<1x128xf32, #tpu.memory_space<vmem>>, %arg6: memref<128x128xbf16, #tpu.memory_space<vmem>>, %arg7: memref<1x128xf32, #tpu.memory_space<vmem>>, %arg8: memref<1x128xf32, #tpu.memory_space<vmem>>, %arg9: memref<1x128xf32, #tpu.memory_space<vmem>>, %arg10: memref<16x128xf32, #tpu.memory_space<vmem>>) attributes {dimension_semantics = [#tpu.dimension_semantics<parallel>], iteration_bounds = array<i64: 1>, scalar_prefetch = 0 : i64, scratch_operands = 0 : i64, tpu.core_type = #tpu.core_type<tc>, window_params = [{transform_indices = @transform_0, window_bounds = array<i64: 16, 128>}, {transform_indices = @transform_1, window_bounds = array<i64: 16, 128>}, {pipeline_mode = #tpu.pipeline_mode<synchronous>, transform_indices = @transform_2, window_bounds = array<i64: 128, 128>}, {pipeline_mode = #tpu.pipeline_mode<synchronous>, transform_indices = @transform_3, window_bounds = array<i64: 128, 128>}, {pipeline_mode = #tpu.pipeline_mode<synchronous>, transform_indices = @transform_4, window_bounds = array<i64: 1, 128>}, {pipeline_mode = #tpu.pipeline_mode<synchronous>, transform_indices = @transform_5, window_bounds = array<i64: 128, 128>}, {pipeline_mode = #tpu.pipeline_mode<synchronous>, transform_indices = @transform_6, window_bounds = array<i64: 1, 128>}, {pipeline_mode = #tpu.pipeline_mode<synchronous>, transform_indices = @transform_7, window_bounds = array<i64: 1, 128>}, {pipeline_mode = #tpu.pipeline_mode<synchronous>, transform_indices = @transform_8, window_bounds = array<i64: 1, 128>}, {transform_indices = @transform_9, window_bounds = array<i64: 16, 128>}]} {
    %c0 = arith.constant 0 : index
    %c0_0 = arith.constant 0 : index
    %0 = vector.load %arg1[%c0, %c0_0] : memref<16x128xbf16, #tpu.memory_space<vmem>>, vector<16x128xbf16>
    %c0_1 = arith.constant 0 : index
    %c0_2 = arith.constant 0 : index
    %1 = vector.load %arg3[%c0_1, %c0_2] : memref<128x128xbf16, #tpu.memory_space<vmem>>, vector<128x128xbf16>
    %cst = arith.constant dense<0.000000e+00> : vector<16x128xf32>
    %2 = tpu.matmul %0, %1, %cst {dimension_numbers = #tpu.dot_dimension_numbers<[1], [0], [0], [1], [0, 0, 1, 1], [], []>} : vector<16x128xbf16>, vector<128x128xbf16>, vector<16x128xf32> -> vector<16x128xf32>
    %c0_3 = arith.constant 0 : index
    %c0_4 = arith.constant 0 : index
    %3 = vector.load %arg2[%c0_3, %c0_4] : memref<16x128xbf16, #tpu.memory_space<vmem>>, vector<16x128xbf16>
    %c0_5 = arith.constant 0 : index
    %c0_6 = arith.constant 0 : index
    %4 = vector.load %arg4[%c0_5, %c0_6] : memref<128x128xbf16, #tpu.memory_space<vmem>>, vector<128x128xbf16>
    %cst_7 = arith.constant dense<0.000000e+00> : vector<16x128xf32>
    %5 = tpu.matmul %3, %4, %cst_7 {dimension_numbers = #tpu.dot_dimension_numbers<[1], [0], [0], [1], [0, 0, 1, 1], [], []>} : vector<16x128xbf16>, vector<128x128xbf16>, vector<16x128xf32> -> vector<16x128xf32>
    %6 = arith.addf %2, %5 : vector<16x128xf32>
    %c0_8 = arith.constant 0 : index
    %c0_9 = arith.constant 0 : index
    %7 = vector.load %arg5[%c0_8, %c0_9] : memref<1x128xf32, #tpu.memory_space<vmem>>, vector<1x128xf32>
    %8 = vector.broadcast %7 : vector<1x128xf32> to vector<16x128xf32>
    %9 = arith.addf %6, %8 : vector<16x128xf32>
    %cst_10 = arith.constant 0.000000e+00 : f32
    %10 = vector.broadcast %cst_10 : f32 to vector<16x128xf32>
    %11 = arith.maximumf %9, %10 : vector<16x128xf32>
    %12 = arith.truncf %11 : vector<16x128xf32> to vector<16x128xbf16>
    %c0_11 = arith.constant 0 : index
    %c0_12 = arith.constant 0 : index
    %13 = vector.load %arg6[%c0_11, %c0_12] : memref<128x128xbf16, #tpu.memory_space<vmem>>, vector<128x128xbf16>
    %cst_13 = arith.constant dense<0.000000e+00> : vector<16x128xf32>
    %14 = tpu.matmul %12, %13, %cst_13 {dimension_numbers = #tpu.dot_dimension_numbers<[1], [0], [0], [1], [0, 0, 1, 1], [], []>} : vector<16x128xbf16>, vector<128x128xbf16>, vector<16x128xf32> -> vector<16x128xf32>
    %c0_14 = arith.constant 0 : index
    %c0_15 = arith.constant 0 : index
    %15 = vector.load %arg7[%c0_14, %c0_15] : memref<1x128xf32, #tpu.memory_space<vmem>>, vector<1x128xf32>
    %16 = vector.broadcast %15 : vector<1x128xf32> to vector<16x128xf32>
    %17 = arith.addf %14, %16 : vector<16x128xf32>
    %cst_16 = arith.constant dense<0.000000e+00> : vector<16xf32>
    %18 = vector.multi_reduction <add>, %17, %cst_16 [1] : vector<16x128xf32> to vector<16xf32>
    %19 = vector.shape_cast %18 : vector<16xf32> to vector<16x1xf32>
    %20 = arith.mulf %17, %17 : vector<16x128xf32>
    %cst_17 = arith.constant dense<0.000000e+00> : vector<16xf32>
    %21 = vector.multi_reduction <add>, %20, %cst_17 [1] : vector<16x128xf32> to vector<16xf32>
    %22 = vector.shape_cast %21 : vector<16xf32> to vector<16x1xf32>
    %cst_18 = arith.constant 3.200000e+01 : f32
    %23 = vector.broadcast %cst_18 : f32 to vector<16x1xf32>
    %24 = arith.divf %19, %23 : vector<16x1xf32>
    %cst_19 = arith.constant 3.200000e+01 : f32
    %25 = vector.broadcast %cst_19 : f32 to vector<16x1xf32>
    %26 = arith.divf %22, %25 : vector<16x1xf32>
    %27 = arith.mulf %24, %24 : vector<16x1xf32>
    %28 = arith.subf %26, %27 : vector<16x1xf32>
    %cst_20 = arith.constant 0.000000e+00 : f32
    %29 = vector.broadcast %cst_20 : f32 to vector<16x1xf32>
    %30 = arith.maximumf %28, %29 : vector<16x1xf32>
    %31 = vector.broadcast %24 : vector<16x1xf32> to vector<16x128xf32>
    %32 = arith.subf %17, %31 : vector<16x128xf32>
    %cst_21 = arith.constant 9.99999974E-6 : f32
    %33 = vector.broadcast %cst_21 : f32 to vector<16x1xf32>
    %34 = arith.addf %30, %33 : vector<16x1xf32>
    %35 = math.rsqrt %34 : vector<16x1xf32>
    %36 = vector.broadcast %35 : vector<16x1xf32> to vector<16x128xf32>
    %37 = arith.mulf %32, %36 : vector<16x128xf32>
    %c0_22 = arith.constant 0 : index
    %c0_23 = arith.constant 0 : index
    %38 = vector.load %arg8[%c0_22, %c0_23] : memref<1x128xf32, #tpu.memory_space<vmem>>, vector<1x128xf32>
    %39 = vector.broadcast %38 : vector<1x128xf32> to vector<16x128xf32>
    %40 = arith.mulf %37, %39 : vector<16x128xf32>
    %c0_24 = arith.constant 0 : index
    %c0_25 = arith.constant 0 : index
    %41 = vector.load %arg9[%c0_24, %c0_25] : memref<1x128xf32, #tpu.memory_space<vmem>>, vector<1x128xf32>
    %42 = vector.broadcast %41 : vector<1x128xf32> to vector<16x128xf32>
    %43 = arith.addf %40, %42 : vector<16x128xf32>
    %c0_26 = arith.constant 0 : index
    %c0_27 = arith.constant 0 : index
    %44 = vector.load %arg10[%c0_26, %c0_27] : memref<16x128xf32, #tpu.memory_space<vmem>>, vector<16x128xf32>
    tpu.vector_store %arg10[%c0_26, %c0_27], %43 {strides = array<i32>} : memref<16x128xf32, #tpu.memory_space<vmem>>, vector<16x128xf32>,
    return
  }
  func.func @transform_0(%arg0: i32) -> (i32, i32) {
    %c0_i32 = arith.constant 0 : i32
    %c0_i32_0 = arith.constant 0 : i32
    return %arg0, %c0_i32 : i32, i32
  }
  func.func @transform_1(%arg0: i32) -> (i32, i32) {
    %c0_i32 = arith.constant 0 : i32
    %c0_i32_0 = arith.constant 0 : i32
    return %arg0, %c0_i32 : i32, i32
  }
  func.func @transform_2(%arg0: i32) -> (i32, i32) {
    %c0_i32 = arith.constant 0 : i32
    %c0_i32_0 = arith.constant 0 : i32
    %c0_i32_1 = arith.constant 0 : i32
    return %c0_i32, %c0_i32_0 : i32, i32
  }
  func.func @transform_3(%arg0: i32) -> (i32, i32) {
    %c0_i32 = arith.constant 0 : i32
    %c0_i32_0 = arith.constant 0 : i32
    %c0_i32_1 = arith.constant 0 : i32
    return %c0_i32, %c0_i32_0 : i32, i32
  }
  func.func @transform_4(%arg0: i32) -> (i32, i32) {
    %c0_i32 = arith.constant 0 : i32
    %c0_i32_0 = arith.constant 0 : i32
    %c0_i32_1 = arith.constant 0 : i32
    return %c0_i32, %c0_i32_0 : i32, i32
  }
  func.func @transform_5(%arg0: i32) -> (i32, i32) {
    %c0_i32 = arith.constant 0 : i32
    %c0_i32_0 = arith.constant 0 : i32
    %c0_i32_1 = arith.constant 0 : i32
    return %c0_i32, %c0_i32_0 : i32, i32
  }
  func.func @transform_6(%arg0: i32) -> (i32, i32) {
    %c0_i32 = arith.constant 0 : i32
    %c0_i32_0 = arith.constant 0 : i32
    %c0_i32_1 = arith.constant 0 : i32
    return %c0_i32, %c0_i32_0 : i32, i32
  }
  func.func @transform_7(%arg0: i32) -> (i32, i32) {
    %c0_i32 = arith.constant 0 : i32
    %c0_i32_0 = arith.constant 0 : i32
    %c0_i32_1 = arith.constant 0 : i32
    return %c0_i32, %c0_i32_0 : i32, i32
  }
  func.func @transform_8(%arg0: i32) -> (i32, i32) {
    %c0_i32 = arith.constant 0 : i32
    %c0_i32_0 = arith.constant 0 : i32
    %c0_i32_1 = arith.constant 0 : i32
    return %c0_i32, %c0_i32_0 : i32, i32
  }
  func.func @transform_9(%arg0: i32) -> (i32, i32) {
    %c0_i32 = arith.constant 0 : i32
    %c0_i32_0 = arith.constant 0 : i32
    return %arg0, %c0_i32 : i32, i32
  }
}

module attributes {stable_mosaic.version = 11 : i64} {
  func.func @atom_ffn_ln_kernel(%arg0: i32, %arg1: memref<16x128xbf16, #tpu.memory_space<vmem>>, %arg2: memref<16x128xbf16, #tpu.memory_space<vmem>>, %arg3: memref<128x128xbf16, #tpu.memory_space<vmem>>, %arg4: memref<128x128xbf16, #tpu.memory_space<vmem>>, %arg5: memref<1x128xf32, #tpu.memory_space<vmem>>, %arg6: memref<128x128xbf16, #tpu.memory_space<vmem>>, %arg7: memref<1x128xf32, #tpu.memory_space<vmem>>, %arg8: memref<1x128xf32, #tpu.memory_space<vmem>>, %arg9: memref<1x128xf32, #tpu.memory_space<vmem>>, %arg10: memref<16x128xf32, #tpu.memory_space<vmem>>) attributes {dimension_semantics = [#tpu.dimension_semantics<parallel>], iteration_bounds = array<i64: 1>, scalar_prefetch = 0 : i64, scratch_operands = 0 : i64, tpu.core_type = #tpu.core_type<tc>, window_params = [{transform_indices = @transform_0, window_bounds = array<i64: 16, 128>}, {transform_indices = @transform_1, window_bounds = array<i64: 16, 128>}, {pipeline_mode = #tpu.pipeline_mode<synchronous>, transform_indices = @transform_2, window_bounds = array<i64: 128, 128>}, {pipeline_mode = #tpu.pipeline_mode<synchronous>, transform_indices = @transform_3, window_bounds = array<i64: 128, 128>}, {pipeline_mode = #tpu.pipeline_mode<synchronous>, transform_indices = @transform_4, window_bounds = array<i64: 1, 128>}, {pipeline_mode = #tpu.pipeline_mode<synchronous>, transform_indices = @transform_5, window_bounds = array<i64: 128, 128>}, {pipeline_mode = #tpu.pipeline_mode<synchronous>, transform_indices = @transform_6, window_bounds = array<i64: 1, 128>}, {pipeline_mode = #tpu.pipeline_mode<synchronous>, transform_indices = @transform_7, window_bounds = array<i64: 1, 128>}, {pipeline_mode = #tpu.pipeline_mode<synchronous>, transform_indices = @transform_8, window_bounds = array<i64: 1, 128>}, {transform_indices = @transform_9, window_bounds = array<i64: 16, 128>}]} {
    %c0 = arith.constant 0 : index
    %c0_0 = arith.constant 0 : index
    %0 = vector.load %arg1[%c0, %c0_0] : memref<16x128xbf16, #tpu.memory_space<vmem>>, vector<16x128xbf16>
    %c0_1 = arith.constant 0 : index
    %c0_2 = arith.constant 0 : index
    %1 = vector.load %arg3[%c0_1, %c0_2] : memref<128x128xbf16, #tpu.memory_space<vmem>>, vector<128x128xbf16>
    %cst = arith.constant dense<0.000000e+00> : vector<16x128xf32>
    %2 = tpu.matmul %0, %1, %cst {dimension_numbers = #tpu.dot_dimension_numbers<[1], [0], [0], [1], [0, 0, 1, 1], [], []>} : vector<16x128xbf16>, vector<128x128xbf16>, vector<16x128xf32> -> vector<16x128xf32>
    %c0_3 = arith.constant 0 : index
    %c0_4 = arith.constant 0 : index
    %3 = vector.load %arg2[%c0_3, %c0_4] : memref<16x128xbf16, #tpu.memory_space<vmem>>, vector<16x128xbf16>
    %c0_5 = arith.constant 0 : index
    %c0_6 = arith.constant 0 : index
    %4 = vector.load %arg4[%c0_5, %c0_6] : memref<128x128xbf16, #tpu.memory_space<vmem>>, vector<128x128xbf16>
    %cst_7 = arith.constant dense<0.000000e+00> : vector<16x128xf32>
    %5 = tpu.matmul %3, %4, %cst_7 {dimension_numbers = #tpu.dot_dimension_numbers<[1], [0], [0], [1], [0, 0, 1, 1], [], []>} : vector<16x128xbf16>, vector<128x128xbf16>, vector<16x128xf32> -> vector<16x128xf32>
    %6 = arith.addf %2, %5 : vector<16x128xf32>
    %c0_8 = arith.constant 0 : index
    %c0_9 = arith.constant 0 : index
    %7 = vector.load %arg5[%c0_8, %c0_9] : memref<1x128xf32, #tpu.memory_space<vmem>>, vector<1x128xf32>
    %8 = vector.broadcast %7 : vector<1x128xf32> to vector<16x128xf32>
    %9 = arith.addf %6, %8 : vector<16x128xf32>
    %cst_10 = arith.constant 0.000000e+00 : f32
    %10 = vector.broadcast %cst_10 : f32 to vector<16x128xf32>
    %11 = arith.maximumf %9, %10 : vector<16x128xf32>
    %12 = arith.truncf %11 : vector<16x128xf32> to vector<16x128xbf16>
    %c0_11 = arith.constant 0 : index
    %c0_12 = arith.constant 0 : index
    %13 = vector.load %arg6[%c0_11, %c0_12] : memref<128x128xbf16, #tpu.memory_space<vmem>>, vector<128x128xbf16>
    %cst_13 = arith.constant dense<0.000000e+00> : vector<16x128xf32>
    %14 = tpu.matmul %12, %13, %cst_13 {dimension_numbers = #tpu.dot_dimension_numbers<[1], [0], [0], [1], [0, 0, 1, 1], [], []>} : vector<16x128xbf16>, vector<128x128xbf16>, vector<16x128xf32> -> vector<16x128xf32>
    %c0_14 = arith.constant 0 : index
    %c0_15 = arith.constant 0 : index
    %15 = vector.load %arg7[%c0_14, %c0_15] : memref<1x128xf32, #tpu.memory_space<vmem>>, vector<1x128xf32>
    %16 = vector.broadcast %15 : vector<1x128xf32> to vector<16x128xf32>
    %17 = arith.addf %14, %16 : vector<16x128xf32>
    %cst_16 = arith.constant dense<0.000000e+00> : vector<16xf32>
    %18 = vector.multi_reduction <add>, %17, %cst_16 [1] : vector<16x128xf32> to vector<16xf32>
    %19 = vector.shape_cast %18 : vector<16xf32> to vector<16x1xf32>
    %20 = arith.mulf %17, %17 : vector<16x128xf32>
    %cst_17 = arith.constant dense<0.000000e+00> : vector<16xf32>
    %21 = vector.multi_reduction <add>, %20, %cst_17 [1] : vector<16x128xf32> to vector<16xf32>
    %22 = vector.shape_cast %21 : vector<16xf32> to vector<16x1xf32>
    %cst_18 = arith.constant 3.200000e+01 : f32
    %23 = vector.broadcast %cst_18 : f32 to vector<16x1xf32>
    %24 = arith.divf %19, %23 : vector<16x1xf32>
    %cst_19 = arith.constant 3.200000e+01 : f32
    %25 = vector.broadcast %cst_19 : f32 to vector<16x1xf32>
    %26 = arith.divf %22, %25 : vector<16x1xf32>
    %27 = arith.mulf %24, %24 : vector<16x1xf32>
    %28 = arith.subf %26, %27 : vector<16x1xf32>
    %cst_20 = arith.constant 0.000000e+00 : f32
    %29 = vector.broadcast %cst_20 : f32 to vector<16x1xf32>
    %30 = arith.maximumf %28, %29 : vector<16x1xf32>
    %31 = vector.broadcast %24 : vector<16x1xf32> to vector<16x128xf32>
    %32 = arith.subf %17, %31 : vector<16x128xf32>
    %cst_21 = arith.constant 9.99999974E-6 : f32
    %33 = vector.broadcast %cst_21 : f32 to vector<16x1xf32>
    %34 = arith.addf %30, %33 : vector<16x1xf32>
    %35 = math.rsqrt %34 : vector<16x1xf32>
    %36 = vector.broadcast %35 : vector<16x1xf32> to vector<16x128xf32>
    %37 = arith.mulf %32, %36 : vector<16x128xf32>
    %c0_22 = arith.constant 0 : index
    %c0_23 = arith.constant 0 : index
    %38 = vector.load %arg8[%c0_22, %c0_23] : memref<1x128xf32, #tpu.memory_space<vmem>>, vector<1x128xf32>
    %39 = vector.broadcast %38 : vector<1x128xf32> to vector<16x128xf32>
    %40 = arith.mulf %37, %39 : vector<16x128xf32>
    %c0_24 = arith.constant 0 : index
    %c0_25 = arith.constant 0 : index
    %41 = vector.load %arg9[%c0_24, %c0_25] : memref<1x128xf32, #tpu.memory_space<vmem>>, vector<1x128xf32>
    %42 = vector.broadcast %41 : vector<1x128xf32> to vector<16x128xf32>
    %43 = arith.addf %40, %42 : vector<16x128xf32>
    %c0_26 = arith.constant 0 : index
    %c0_27 = arith.constant 0 : index
    %44 = vector.load %arg10[%c0_26, %c0_27] : memref<16x128xf32, #tpu.memory_space<vmem>>, vector<16x128xf32>
    tpu.vector_store %arg10[%c0_26, %c0_27], %43 {strides = array<i32>} : memref<16x128xf32, #tpu.memory_space<vmem>>, vector<16x128xf32>,
    return
  }
  func.func @transform_0(%arg0: i32) -> (i32, i32) {
    %c0_i32 = arith.constant 0 : i32
    %c0_i32_0 = arith.constant 0 : i32
    return %arg0, %c0_i32 : i32, i32
  }
  func.func @transform_1(%arg0: i32) -> (i32, i32) {
    %c0_i32 = arith.constant 0 : i32
    %c0_i32_0 = arith.constant 0 : i32
    return %arg0, %c0_i32 : i32, i32
  }
  func.func @transform_2(%arg0: i32) -> (i32, i32) {
    %c0_i32 = arith.constant 0 : i32
    %c0_i32_0 = arith.constant 0 : i32
    %c0_i32_1 = arith.constant 0 : i32
    return %c0_i32, %c0_i32_0 : i32, i32
  }
  func.func @transform_3(%arg0: i32) -> (i32, i32) {
    %c0_i32 = arith.constant 0 : i32
    %c0_i32_0 = arith.constant 0 : i32
    %c0_i32_1 = arith.constant 0 : i32
    return %c0_i32, %c0_i32_0 : i32, i32
  }
  func.func @transform_4(%arg0: i32) -> (i32, i32) {
    %c0_i32 = arith.constant 0 : i32
    %c0_i32_0 = arith.constant 0 : i32
    %c0_i32_1 = arith.constant 0 : i32
    return %c0_i32, %c0_i32_0 : i32, i32
  }
  func.func @transform_5(%arg0: i32) -> (i32, i32) {
    %c0_i32 = arith.constant 0 : i32
    %c0_i32_0 = arith.constant 0 : i32
    %c0_i32_1 = arith.constant 0 : i32
    return %c0_i32, %c0_i32_0 : i32, i32
  }
  func.func @transform_6(%arg0: i32) -> (i32, i32) {
    %c0_i32 = arith.constant 0 : i32
    %c0_i32_0 = arith.constant 0 : i32
    %c0_i32_1 = arith.constant 0 : i32
    return %c0_i32, %c0_i32_0 : i32, i32
  }
  func.func @transform_7(%arg0: i32) -> (i32, i32) {
    %c0_i32 = arith.constant 0 : i32
    %c0_i32_0 = arith.constant 0 : i32
    %c0_i32_1 = arith.constant 0 : i32
    return %c0_i32, %c0_i32_0 : i32, i32
  }
  func.func @transform_8(%arg0: i32) -> (i32, i32) {
    %c0_i32 = arith.constant 0 : i32
    %c0_i32_0 = arith.constant 0 : i32
    %c0_i32_1 = arith.constant 0 : i32
    return %c0_i32, %c0_i32_0 : i32, i32
  }
  func.func @transform_9(%arg0: i32) -> (i32, i32) {
    %c0_i32 = arith.constant 0 : i32
    %c0_i32_0 = arith.constant 0 : i32
    return %arg0, %c0_i32 : i32, i32
  }
}

</mosaic_0001>

<llo_original>
// kernel: custom-call
$region0: #{custom-call}
  %s0 = inlined_call_operand.vmem [shape: u32[16], index: 0, kind: output, shape index: {}]

// kernel: _node_view_readout_impl.1
$region0: #{_node_view_readout_impl.1}
  #allocation0 [shape = 'u32[]', space=smem, size = 0x4, offset = 0x4, fixed_abs, tag = 'smem constant byte address 0x4 - core index']
  #allocation1 [shape = 'u32[144,128]{1,0:T(1,128)}', space=vmem, size = 0x12000, scoped, tag = 'internal scratch']
  %s0 = inlined_call_operand.vmem [shape: bf16[16,128], index: 0, kind: input, shape index: {}]
  %s1 = inlined_call_operand.vmem [shape: bf16[16,128], index: 1, kind: input, shape index: {}]
  %s2 = inlined_call_operand.vmem [shape: bf16[128,128], index: 2, kind: input, shape index: {}]
  %s3 = inlined_call_operand.vmem [shape: bf16[128,128], index: 3, kind: input, shape index: {}]
  %s4 = inlined_call_operand.vmem [shape: f32[1,128], index: 4, kind: input, shape index: {}]
  %s5 = inlined_call_operand.vmem [shape: bf16[128,128], index: 5, kind: input, shape index: {}]
  %s6 = inlined_call_operand.vmem [shape: f32[1,128], index: 6, kind: input, shape index: {}]
  %s7 = inlined_call_operand.vmem [shape: f32[1,128], index: 7, kind: input, shape index: {}]
  %s8 = inlined_call_operand.vmem [shape: f32[1,128], index: 8, kind: input, shape index: {}]
  %s9 = inlined_call_operand.vmem [shape: f32[16,128], index: 9, kind: output, shape index: {}]
  %s10 = sld [smem:[#allocation0]]
  $region46: #{_node_view_readout_impl.1} parent=0
    _
  %s12 = ssub.s32 1, %s10
  %s13 = scalar_select 0, %s12, %s10
  // Predicated region
  $region2: #{_node_view_readout_impl.1} parent=0 // pred_check
    _
  $region3: #{_node_view_readout_impl.1} parent=0 // pred_check_branch
    %15 = sbr.rel (0) target = $region5
  $region4: #{_node_view_readout_impl.1} parent=0 // pred_region
    _
  $region5: #{_node_view_readout_impl.1} parent=0 // pred_fallthru
    _
  // Predicated region
  $region6: #{_node_view_readout_impl.1} parent=0 // pred_check
    _
  $region7: #{_node_view_readout_impl.1} parent=0 // pred_check_branch
    %17 = sbr.rel (0) target = $region9
  $region8: #{_node_view_readout_impl.1} parent=0 // pred_region
    _
  $region9: #{_node_view_readout_impl.1} parent=0 // pred_fallthru
    _
  // Predicated region
  $region10: #{_node_view_readout_impl.1} parent=0 // pred_check
    _
  $region11: #{_node_view_readout_impl.1} parent=0 // pred_check_branch
    %19 = sbr.rel (0) target = $region13
  $region12: #{_node_view_readout_impl.1} parent=0 // pred_region
    _
  $region13: #{_node_view_readout_impl.1} parent=0 // pred_fallthru
    _
  // Predicated region
  $region14: #{_node_view_readout_impl.1} parent=0 // pred_check
    _
  $region15: #{_node_view_readout_impl.1} parent=0 // pred_check_branch
    %21 = sbr.rel (0) target = $region17
  $region16: #{_node_view_readout_impl.1} parent=0 // pred_region
    _
  $region17: #{_node_view_readout_impl.1} parent=0 // pred_fallthru
    _
  // Predicated region
  $region18: #{_node_view_readout_impl.1} parent=0 // pred_check
    _
  $region19: #{_node_view_readout_impl.1} parent=0 // pred_check_branch
    %23 = sbr.rel (0) target = $region21
  $region20: #{_node_view_readout_impl.1} parent=0 // pred_region
    _
  $region21: #{_node_view_readout_impl.1} parent=0 // pred_fallthru
    _
  // Predicated region
  $region22: #{_node_view_readout_impl.1} parent=0 // pred_check
    _
  $region23: #{_node_view_readout_impl.1} parent=0 // pred_check_branch
    %25 = sbr.rel (0) target = $region25
  $region24: #{_node_view_readout_impl.1} parent=0 // pred_region
    _
  $region25: #{_node_view_readout_impl.1} parent=0 // pred_fallthru
    _
  // Predicated region
  $region26: #{_node_view_readout_impl.1} parent=0 // pred_check
    _
  $region27: #{_node_view_readout_impl.1} parent=0 // pred_check_branch
    %27 = sbr.rel (0) target = $region29
  $region28: #{_node_view_readout_impl.1} parent=0 // pred_region
    _
  $region29: #{_node_view_readout_impl.1} parent=0 // pred_fallthru
    _
  // Predicated region
  $region30: #{_node_view_readout_impl.1} parent=0 // pred_check
    _
  $region31: #{_node_view_readout_impl.1} parent=0 // pred_check_branch
    %29 = sbr.rel (0) target = $region33
  $region32: #{_node_view_readout_impl.1} parent=0 // pred_region
    _
  $region33: #{_node_view_readout_impl.1} parent=0 // pred_fallthru
    _
  // Predicated region
  $region34: #{_node_view_readout_impl.1} parent=0 // pred_check
    _
  $region35: #{_node_view_readout_impl.1} parent=0 // pred_check_branch
    %31 = sbr.rel (0) target = $region37
  $region36: #{_node_view_readout_impl.1} parent=0 // pred_region
    _
  $region37: #{_node_view_readout_impl.1} parent=0 // pred_fallthru
    _
  %v33 = vld [vmem:[%s0] sm:$0xf]
  %v34 = vld [vmem:[%s0 + $0x4] sm:$0xf]
  %v35 = vld [vmem:[%s2] sm:$0xf]
  %v36 = vld [vmem:[%s2 + $0x4] sm:$0xf]
  %v37 = vld [vmem:[%s2 + $0x8] sm:$0xf]
  %v38 = vld [vmem:[%s2 + $0xc] sm:$0xf]
  %v39 = vld [vmem:[%s2 + $0x10] sm:$0xf]
  %v40 = vld [vmem:[%s2 + $0x14] sm:$0xf]
  %v41 = vld [vmem:[%s2 + $0x18] sm:$0xf]
  %v42 = vld [vmem:[%s2 + $0x1c] sm:$0xf]
  %v43 = vld [vmem:[%s2 + $0x20] sm:$0xf]
  %v44 = vld [vmem:[%s2 + $0x24] sm:$0xf]
  %v45 = vld [vmem:[%s2 + $0x28] sm:$0xf]
  %v46 = vld [vmem:[%s2 + $0x2c] sm:$0xf]
  %v47 = vld [vmem:[%s2 + $0x30] sm:$0xf]
  %v48 = vld [vmem:[%s2 + $0x34] sm:$0xf]
  %v49 = vld [vmem:[%s2 + $0x38] sm:$0xf]
  %v50 = vld [vmem:[%s2 + $0x3c] sm:$0xf]
  %v51 = vld [vmem:[%s1] sm:$0xf]
  %v52 = vld [vmem:[%s1 + $0x4] sm:$0xf]
  %v53 = vld [vmem:[%s3] sm:$0xf]
  %v54 = vld [vmem:[%s3 + $0x4] sm:$0xf]
  %v55 = vld [vmem:[%s3 + $0x8] sm:$0xf]
  %v56 = vld [vmem:[%s3 + $0xc] sm:$0xf]
  %v57 = vld [vmem:[%s3 + $0x10] sm:$0xf]
  %v58 = vld [vmem:[%s3 + $0x14] sm:$0xf]
  %v59 = vld [vmem:[%s3 + $0x18] sm:$0xf]
  %v60 = vld [vmem:[%s3 + $0x1c] sm:$0xf]
  %v61 = vld [vmem:[%s3 + $0x20] sm:$0xf]
  %v62 = vld [vmem:[%s3 + $0x24] sm:$0xf]
  %v63 = vld [vmem:[%s3 + $0x28] sm:$0xf]
  %v64 = vld [vmem:[%s3 + $0x2c] sm:$0xf]
  %v65 = vld [vmem:[%s3 + $0x30] sm:$0xf]
  %v66 = vld [vmem:[%s3 + $0x34] sm:$0xf]
  %v67 = vld [vmem:[%s3 + $0x38] sm:$0xf]
  %v68 = vld [vmem:[%s3 + $0x3c] sm:$0xf]
  %v71 = vunpack.c.l.b16 %v51
  %v72 = vunpack.c.l.b16 %v52
  %v73 = vpack.c.b16 %v72, %v71
  %v91 = vunpack.c.l.b16 %v53
  %v92 = vunpack.c.l.b16 %v54
  %v93 = vunpack.c.l.b16 %v55
  %v94 = vunpack.c.l.b16 %v56
  %v95 = vunpack.c.l.b16 %v57
  %v96 = vunpack.c.l.b16 %v58
  %v97 = vunpack.c.l.b16 %v59
  %v98 = vunpack.c.l.b16 %v60
  %v99 = vunpack.c.l.b16 %v61
  %v100 = vunpack.c.l.b16 %v62
  %v101 = vunpack.c.l.b16 %v63
  %v102 = vunpack.c.l.b16 %v64
  %v103 = vunpack.c.l.b16 %v65
  %v104 = vunpack.c.l.b16 %v66
  %v105 = vunpack.c.l.b16 %v67
  %v106 = vunpack.c.l.b16 %v68
  %v107 = vpack.c.b16 %v92, %v91
  %v108 = vpack.c.b16 %v94, %v93
  %v109 = vpack.c.b16 %v96, %v95
  %v110 = vpack.c.b16 %v98, %v97
  %v111 = vpack.c.b16 %v100, %v99
  %v112 = vpack.c.b16 %v102, %v101
  %v113 = vpack.c.b16 %v104, %v103
  %v114 = vpack.c.b16 %v106, %v105
  %123 = vmatprep.subr.bf16.mxu0 0
  %124 = vmatpush1.bf16.msra.mxu0 %v107
  %125 = vmatprep.subr.bf16.mxu0 0
  %126 = vmatpush1.bf16.msra.mxu0 %v108
  %127 = vmatprep.subr.bf16.mxu0 0
  %128 = vmatpush1.bf16.msra.mxu0 %v109
  %129 = vmatprep.subr.bf16.mxu0 0
  %130 = vmatpush1.bf16.msra.mxu0 %v110
  %131 = vmatprep.subr.bf16.mxu0 0
  %132 = vmatpush1.bf16.msra.mxu0 %v111
  %133 = vmatprep.subr.bf16.mxu0 0
  %134 = vmatpush1.bf16.msra.mxu0 %v112
  %135 = vmatprep.subr.bf16.mxu0 0
  %136 = vmatpush1.bf16.msra.mxu0 %v113
  %137 = vmatprep.subr.bf16.mxu0 0
  %138 = vmatpush1.bf16.msra.mxu0 %v114
  %139 = vmatprep.subr.bf16.mxu0 0
  %140 = vmatpush1.bf16.msra.mxu0 0
  %141 = vmatprep.subr.bf16.mxu0 0
  %142 = vmatpush1.bf16.msra.mxu0 0
  %143 = vmatprep.subr.bf16.mxu0 0
  %144 = vmatpush1.bf16.msra.mxu0 0
  %145 = vmatprep.subr.bf16.mxu0 0
  %146 = vmatpush1.bf16.msra.mxu0 0
  %147 = vmatprep.subr.bf16.mxu0 0
  %148 = vmatpush1.bf16.msra.mxu0 0
  %149 = vmatprep.subr.bf16.mxu0 0
  %150 = vmatpush1.bf16.msra.mxu0 0
  %151 = vmatprep.subr.bf16.mxu0 0
  %152 = vmatpush1.bf16.msra.mxu0 0
  %153 = vmatprep.subr.bf16.mxu0 0
  %154 = vmatpush1.bf16.msra.mxu0 0
  %155 = vmatprep.mubr.bf16.mxu0 0
  %156 = vmatmul.mubr.bf16.gmra.mrb[0].mxu0 %v73
  %v157 = vpop.f32.mrb[0].mxu0
  %v158 = vadd.f32 0.0, %v157
  %v159 = vpop.f32.mrb[0].mxu0
  %v160 = vpop.f32.mrb[0].mxu0
  %v161 = vadd.f32 0.0, %v160
  %v162 = vpop.f32.mrb[0].mxu0
  %163 = vdwg.mxu0
  %v166 = vunpack.c.l.b16 %v33
  %v167 = vunpack.c.l.b16 %v34
  %v168 = vpack.c.b16 %v167, %v166
  %v186 = vunpack.c.l.b16 %v35
  %v187 = vunpack.c.l.b16 %v36
  %v188 = vunpack.c.l.b16 %v37
  %v189 = vunpack.c.l.b16 %v38
  %v190 = vunpack.c.l.b16 %v39
  %v191 = vunpack.c.l.b16 %v40
  %v192 = vunpack.c.l.b16 %v41
  %v193 = vunpack.c.l.b16 %v42
  %v194 = vunpack.c.l.b16 %v43
  %v195 = vunpack.c.l.b16 %v44
  %v196 = vunpack.c.l.b16 %v45
  %v197 = vunpack.c.l.b16 %v46
  %v198 = vunpack.c.l.b16 %v47
  %v199 = vunpack.c.l.b16 %v48
  %v200 = vunpack.c.l.b16 %v49
  %v201 = vunpack.c.l.b16 %v50
  %v202 = vpack.c.b16 %v187, %v186
  %v203 = vpack.c.b16 %v189, %v188
  %v204 = vpack.c.b16 %v191, %v190
  %v205 = vpack.c.b16 %v193, %v192
  %v206 = vpack.c.b16 %v195, %v194
  %v207 = vpack.c.b16 %v197, %v196
  %v208 = vpack.c.b16 %v199, %v198
  %v209 = vpack.c.b16 %v201, %v200
  %218 = vmatprep.subr.bf16.mxu0 0
  %219 = vmatpush1.bf16.msra.mxu0 %v202
  %220 = vmatprep.subr.bf16.mxu0 0
  %221 = vmatpush1.bf16.msra.mxu0 %v203
  %222 = vmatprep.subr.bf16.mxu0 0
  %223 = vmatpush1.bf16.msra.mxu0 %v204
  %224 = vmatprep.subr.bf16.mxu0 0
  %225 = vmatpush1.bf16.msra.mxu0 %v205
  %226 = vmatprep.subr.bf16.mxu0 0
  %227 = vmatpush1.bf16.msra.mxu0 %v206
  %228 = vmatprep.subr.bf16.mxu0 0
  %229 = vmatpush1.bf16.msra.mxu0 %v207
  %230 = vmatprep.subr.bf16.mxu0 0
  %231 = vmatpush1.bf16.msra.mxu0 %v208
  %232 = vmatprep.subr.bf16.mxu0 0
  %233 = vmatpush1.bf16.msra.mxu0 %v209
  %234 = vmatprep.subr.bf16.mxu0 0
  %235 = vmatpush1.bf16.msra.mxu0 0
  %236 = vmatprep.subr.bf16.mxu0 0
  %237 = vmatpush1.bf16.msra.mxu0 0
  %238 = vmatprep.subr.bf16.mxu0 0
  %239 = vmatpush1.bf16.msra.mxu0 0
  %240 = vmatprep.subr.bf16.mxu0 0
  %241 = vmatpush1.bf16.msra.mxu0 0
  %242 = vmatprep.subr.bf16.mxu0 0
  %243 = vmatpush1.bf16.msra.mxu0 0
  %244 = vmatprep.subr.bf16.mxu0 0
  %245 = vmatpush1.bf16.msra.mxu0 0
  %246 = vmatprep.subr.bf16.mxu0 0
  %247 = vmatpush1.bf16.msra.mxu0 0
  %248 = vmatprep.subr.bf16.mxu0 0
  %249 = vmatpush1.bf16.msra.mxu0 0
  %250 = vmatprep.mubr.bf16.mxu0 0
  %251 = vmatmul.mubr.bf16.gmra.mrb[0].mxu0 %v168
  %v252 = vpop.f32.mrb[0].mxu0
  %v253 = vadd.f32 %v158, %v252
  %v254 = vpop.f32.mrb[0].mxu0
  %v255 = vpop.f32.mrb[0].mxu0
  %v256 = vadd.f32 %v161, %v255
  %v257 = vpop.f32.mrb[0].mxu0
  %258 = vdwg.mxu0
  %v259 = vld [vmem:[%s4] sm:$0x1]
  %v261 = vlaneseq
  %v262 = vshrl.u32 %v261, 7
  %v263 = vsub.s32 0, %v262
  %v264 = vrot.slane %v259, %v263
  %v266 = vadd.f32 %v253, %v264
  %v267 = vadd.f32 %v256, %v264
  %v268 = vmax.f32 %v266, 0.0
  %v269 = vmax.f32 %v267, 0.0
  %v270 = vpack.c.bf16 %v269, %v268
  %v271 = vld [vmem:[%s5] sm:$0xf]
  %v272 = vld [vmem:[%s5 + $0x4] sm:$0xf]
  %v273 = vld [vmem:[%s5 + $0x8] sm:$0xf]
  %v274 = vld [vmem:[%s5 + $0xc] sm:$0xf]
  %v275 = vld [vmem:[%s5 + $0x10] sm:$0xf]
  %v276 = vld [vmem:[%s5 + $0x14] sm:$0xf]
  %v277 = vld [vmem:[%s5 + $0x18] sm:$0xf]
  %v278 = vld [vmem:[%s5 + $0x1c] sm:$0xf]
  %v279 = vld [vmem:[%s5 + $0x20] sm:$0xf]
  %v280 = vld [vmem:[%s5 + $0x24] sm:$0xf]
  %v281 = vld [vmem:[%s5 + $0x28] sm:$0xf]
  %v282 = vld [vmem:[%s5 + $0x2c] sm:$0xf]
  %v283 = vld [vmem:[%s5 + $0x30] sm:$0xf]
  %v284 = vld [vmem:[%s5 + $0x34] sm:$0xf]
  %v285 = vld [vmem:[%s5 + $0x38] sm:$0xf]
  %v286 = vld [vmem:[%s5 + $0x3c] sm:$0xf]
  %v287 = vld [vmem:[%s6] sm:$0x1]
  %v289 = vlaneseq
  %v290 = vshrl.u32 %v289, 7
  %v291 = vsub.s32 0, %v290
  %v292 = vrot.slane %v287, %v291
  %v310 = vunpack.c.l.b16 %v271
  %v311 = vunpack.c.l.b16 %v272
  %v312 = vunpack.c.l.b16 %v273
  %v313 = vunpack.c.l.b16 %v274
  %v314 = vunpack.c.l.b16 %v275
  %v315 = vunpack.c.l.b16 %v276
  %v316 = vunpack.c.l.b16 %v277
  %v317 = vunpack.c.l.b16 %v278
  %v318 = vunpack.c.l.b16 %v279
  %v319 = vunpack.c.l.b16 %v280
  %v320 = vunpack.c.l.b16 %v281
  %v321 = vunpack.c.l.b16 %v282
  %v322 = vunpack.c.l.b16 %v283
  %v323 = vunpack.c.l.b16 %v284
  %v324 = vunpack.c.l.b16 %v285
  %v325 = vunpack.c.l.b16 %v286
  %v326 = vpack.c.b16 %v311, %v310
  %v327 = vpack.c.b16 %v313, %v312
  %v328 = vpack.c.b16 %v315, %v314
  %v329 = vpack.c.b16 %v317, %v316
  %v330 = vpack.c.b16 %v319, %v318
  %v331 = vpack.c.b16 %v321, %v320
  %v332 = vpack.c.b16 %v323, %v322
  %v333 = vpack.c.b16 %v325, %v324
  %342 = vmatprep.subr.bf16.mxu0 0
  %343 = vmatpush1.bf16.msra.mxu0 %v326
  %344 = vmatprep.subr.bf16.mxu0 0
  %345 = vmatpush1.bf16.msra.mxu0 %v327
  %346 = vmatprep.subr.bf16.mxu0 0
  %347 = vmatpush1.bf16.msra.mxu0 %v328
  %348 = vmatprep.subr.bf16.mxu0 0
  %349 = vmatpush1.bf16.msra.mxu0 %v329
  %350 = vmatprep.subr.bf16.mxu0 0
  %351 = vmatpush1.bf16.msra.mxu0 %v330
  %352 = vmatprep.subr.bf16.mxu0 0
  %353 = vmatpush1.bf16.msra.mxu0 %v331
  %354 = vmatprep.subr.bf16.mxu0 0
  %355 = vmatpush1.bf16.msra.mxu0 %v332
  %356 = vmatprep.subr.bf16.mxu0 0
  %357 = vmatpush1.bf16.msra.mxu0 %v333
  %358 = vmatprep.subr.bf16.mxu0 0
  %359 = vmatpush1.bf16.msra.mxu0 0
  %360 = vmatprep.subr.bf16.mxu0 0
  %361 = vmatpush1.bf16.msra.mxu0 0
  %362 = vmatprep.subr.bf16.mxu0 0
  %363 = vmatpush1.bf16.msra.mxu0 0
  %364 = vmatprep.subr.bf16.mxu0 0
  %365 = vmatpush1.bf16.msra.mxu0 0
  %366 = vmatprep.subr.bf16.mxu0 0
  %367 = vmatpush1.bf16.msra.mxu0 0
  %368 = vmatprep.subr.bf16.mxu0 0
  %369 = vmatpush1.bf16.msra.mxu0 0
  %370 = vmatprep.subr.bf16.mxu0 0
  %371 = vmatpush1.bf16.msra.mxu0 0
  %372 = vmatprep.subr.bf16.mxu0 0
  %373 = vmatpush1.bf16.msra.mxu0 0
  %374 = vmatprep.mubr.bf16.mxu0 0
  %375 = vmatmul.mubr.bf16.gmra.mrb[0].mxu0 %v270
  %v376 = vpop.f32.mrb[0].mxu0
  %v377 = vadd.f32 %v292, %v376
  %v378 = vpop.f32.mrb[0].mxu0
  %v379 = vpop.f32.mrb[0].mxu0
  %v380 = vadd.f32 %v292, %v379
  %v381 = vpop.f32.mrb[0].mxu0
  %382 = vdwg.mxu0
  %383 = vadd.xlane.f32.xlu0 %v377
  %v384 = vpop.xlane.xlu0 %383
  %385 = vadd.xlane.f32.xlu0 %v380
  %v386 = vpop.xlane.xlu0 %385
  %v387 = vmul.f32 %v377, %v377
  %v388 = vmul.f32 %v380, %v380
  %389 = vadd.xlane.f32.xlu0 %v387
  %v390 = vpop.xlane.xlu0 %389
  %391 = vadd.xlane.f32.xlu0 %v388
  %v392 = vpop.xlane.xlu0 %391
  %v393 = vrcp.pop 32.0
  %v394 = vmul.f32 %v384, %v393
  %v395 = vmul.f32 %v386, %v393
  %v396 = vmul.f32 %v390, %v393
  %v397 = vmul.f32 %v392, %v393
  %v398 = vmul.f32 %v394, %v394
  %v399 = vmul.f32 %v395, %v395
  %v400 = vsub.f32 %v396, %v398
  %v401 = vsub.f32 %v397, %v399
  %v402 = vmax.f32 %v400, 0.0
  %v403 = vmax.f32 %v401, 0.0
  %v404 = vsub.f32 %v377, %v394
  %v405 = vsub.f32 %v380, %v395
  %v406 = vadd.f32 %v402, 1e-05
  %v407 = vadd.f32 %v403, 1e-05
  %v408 = vrsqrt.pop %v406
  %v409 = vrsqrt.pop %v407
  %v410 = vmul.f32 %v404, %v408
  %v411 = vmul.f32 %v405, %v409
  %v412 = vld [vmem:[%s7] sm:$0x1]
  %v414 = vlaneseq
  %v415 = vshrl.u32 %v414, 7
  %v416 = vsub.s32 0, %v415
  %v417 = vrot.slane %v412, %v416
  %v419 = vmul.f32 %v410, %v417
  %v420 = vmul.f32 %v411, %v417
  %v421 = vld [vmem:[%s8] sm:$0x1]
  %v423 = vlaneseq
  %v424 = vshrl.u32 %v423, 7
  %v425 = vsub.s32 0, %v424
  %v426 = vrot.slane %v421, %v425
  %v428 = vadd.f32 %v419, %v426
  %v429 = vadd.f32 %v420, %v426
  %430 = vst [vmem:[%s9] sm:$0xff] %v428
  %431 = vst [vmem:[%s9 + $0x8] sm:$0xff] %v429
  // Predicated region
  $region38: #{_node_view_readout_impl.1} parent=0 // pred_check
    _
  $region39: #{_node_view_readout_impl.1} parent=0 // pred_check_branch
    %433 = sbr.rel (0) target = $region41
  $region40: #{_node_view_readout_impl.1} parent=0 // pred_region
    _
  $region41: #{_node_view_readout_impl.1} parent=0 // pred_fallthru
    _
  // Predicated region
  $region42: #{_node_view_readout_impl.1} parent=0 // pred_check
    _
  $region43: #{_node_view_readout_impl.1} parent=0 // pred_check_branch
    %435 = sbr.rel (0) target = $region45
  $region44: #{_node_view_readout_impl.1} parent=0 // pred_region
    _
  $region45: #{_node_view_readout_impl.1} parent=0 // pred_fallthru
    _

// kernel: custom-call
$region0: #{custom-call}
  %s0 = inlined_call_operand.vmem [shape: u32[16], index: 0, kind: output, shape index: {}]

// kernel: _node_view_readout_impl.1
$region0: #{_node_view_readout_impl.1}
  #allocation0 [shape = 'u32[]', space=smem, size = 0x4, offset = 0x4, fixed_abs, tag = 'smem constant byte address 0x4 - core index']
  #allocation1 [shape = 'u32[144,128]{1,0:T(1,128)}', space=vmem, size = 0x12000, scoped, tag = 'internal scratch']
  %s0 = inlined_call_operand.vmem [shape: bf16[16,128], index: 0, kind: input, shape index: {}]
  %s1 = inlined_call_operand.vmem [shape: bf16[16,128], index: 1, kind: input, shape index: {}]
  %s2 = inlined_call_operand.vmem [shape: bf16[128,128], index: 2, kind: input, shape index: {}]
  %s3 = inlined_call_operand.vmem [shape: bf16[128,128], index: 3, kind: input, shape index: {}]
  %s4 = inlined_call_operand.vmem [shape: f32[1,128], index: 4, kind: input, shape index: {}]
  %s5 = inlined_call_operand.vmem [shape: bf16[128,128], index: 5, kind: input, shape index: {}]
  %s6 = inlined_call_operand.vmem [shape: f32[1,128], index: 6, kind: input, shape index: {}]
  %s7 = inlined_call_operand.vmem [shape: f32[1,128], index: 7, kind: input, shape index: {}]
  %s8 = inlined_call_operand.vmem [shape: f32[1,128], index: 8, kind: input, shape index: {}]
  %s9 = inlined_call_operand.vmem [shape: f32[16,128], index: 9, kind: output, shape index: {}]
  %s10 = sld [smem:[#allocation0]]
  $region46: #{_node_view_readout_impl.1} parent=0
    _
  %s12 = ssub.s32 1, %s10
  %s13 = scalar_select 0, %s12, %s10
  // Predicated region
  $region2: #{_node_view_readout_impl.1} parent=0 // pred_check
    _
  $region3: #{_node_view_readout_impl.1} parent=0 // pred_check_branch
    %15 = sbr.rel (0) target = $region5
  $region4: #{_node_view_readout_impl.1} parent=0 // pred_region
    _
  $region5: #{_node_view_readout_impl.1} parent=0 // pred_fallthru
    _
  // Predicated region
  $region6: #{_node_view_readout_impl.1} parent=0 // pred_check
    _
  $region7: #{_node_view_readout_impl.1} parent=0 // pred_check_branch
    %17 = sbr.rel (0) target = $region9
  $region8: #{_node_view_readout_impl.1} parent=0 // pred_region
    _
  $region9: #{_node_view_readout_impl.1} parent=0 // pred_fallthru
    _
  // Predicated region
  $region10: #{_node_view_readout_impl.1} parent=0 // pred_check
    _
  $region11: #{_node_view_readout_impl.1} parent=0 // pred_check_branch
    %19 = sbr.rel (0) target = $region13
  $region12: #{_node_view_readout_impl.1} parent=0 // pred_region
    _
  $region13: #{_node_view_readout_impl.1} parent=0 // pred_fallthru
    _
  // Predicated region
  $region14: #{_node_view_readout_impl.1} parent=0 // pred_check
    _
  $region15: #{_node_view_readout_impl.1} parent=0 // pred_check_branch
    %21 = sbr.rel (0) target = $region17
  $region16: #{_node_view_readout_impl.1} parent=0 // pred_region
    _
  $region17: #{_node_view_readout_impl.1} parent=0 // pred_fallthru
    _
  // Predicated region
  $region18: #{_node_view_readout_impl.1} parent=0 // pred_check
    _
  $region19: #{_node_view_readout_impl.1} parent=0 // pred_check_branch
    %23 = sbr.rel (0) target = $region21
  $region20: #{_node_view_readout_impl.1} parent=0 // pred_region
    _
  $region21: #{_node_view_readout_impl.1} parent=0 // pred_fallthru
    _
  // Predicated region
  $region22: #{_node_view_readout_impl.1} parent=0 // pred_check
    _
  $region23: #{_node_view_readout_impl.1} parent=0 // pred_check_branch
    %25 = sbr.rel (0) target = $region25
  $region24: #{_node_view_readout_impl.1} parent=0 // pred_region
    _
  $region25: #{_node_view_readout_impl.1} parent=0 // pred_fallthru
    _
  // Predicated region
  $region26: #{_node_view_readout_impl.1} parent=0 // pred_check
    _
  $region27: #{_node_view_readout_impl.1} parent=0 // pred_check_branch
    %27 = sbr.rel (0) target = $region29
  $region28: #{_node_view_readout_impl.1} parent=0 // pred_region
    _
  $region29: #{_node_view_readout_impl.1} parent=0 // pred_fallthru
    _
  // Predicated region
  $region30: #{_node_view_readout_impl.1} parent=0 // pred_check
    _
  $region31: #{_node_view_readout_impl.1} parent=0 // pred_check_branch
    %29 = sbr.rel (0) target = $region33
  $region32: #{_node_view_readout_impl.1} parent=0 // pred_region
    _
  $region33: #{_node_view_readout_impl.1} parent=0 // pred_fallthru
    _
  // Predicated region
  $region34: #{_node_view_readout_impl.1} parent=0 // pred_check
    _
  $region35: #{_node_view_readout_impl.1} parent=0 // pred_check_branch
    %31 = sbr.rel (0) target = $region37
  $region36: #{_node_view_readout_impl.1} parent=0 // pred_region
    _
  $region37: #{_node_view_readout_impl.1} parent=0 // pred_fallthru
    _
  %v33 = vld [vmem:[%s0] sm:$0xf]
  %v34 = vld [vmem:[%s0 + $0x4] sm:$0xf]
  %v35 = vld [vmem:[%s2] sm:$0xf]
  %v36 = vld [vmem:[%s2 + $0x4] sm:$0xf]
  %v37 = vld [vmem:[%s2 + $0x8] sm:$0xf]
  %v38 = vld [vmem:[%s2 + $0xc] sm:$0xf]
  %v39 = vld [vmem:[%s2 + $0x10] sm:$0xf]
  %v40 = vld [vmem:[%s2 + $0x14] sm:$0xf]
  %v41 = vld [vmem:[%s2 + $0x18] sm:$0xf]
  %v42 = vld [vmem:[%s2 + $0x1c] sm:$0xf]
  %v43 = vld [vmem:[%s2 + $0x20] sm:$0xf]
  %v44 = vld [vmem:[%s2 + $0x24] sm:$0xf]
  %v45 = vld [vmem:[%s2 + $0x28] sm:$0xf]
  %v46 = vld [vmem:[%s2 + $0x2c] sm:$0xf]
  %v47 = vld [vmem:[%s2 + $0x30] sm:$0xf]
  %v48 = vld [vmem:[%s2 + $0x34] sm:$0xf]
  %v49 = vld [vmem:[%s2 + $0x38] sm:$0xf]
  %v50 = vld [vmem:[%s2 + $0x3c] sm:$0xf]
  %v51 = vld [vmem:[%s1] sm:$0xf]
  %v52 = vld [vmem:[%s1 + $0x4] sm:$0xf]
  %v53 = vld [vmem:[%s3] sm:$0xf]
  %v54 = vld [vmem:[%s3 + $0x4] sm:$0xf]
  %v55 = vld [vmem:[%s3 + $0x8] sm:$0xf]
  %v56 = vld [vmem:[%s3 + $0xc] sm:$0xf]
  %v57 = vld [vmem:[%s3 + $0x10] sm:$0xf]
  %v58 = vld [vmem:[%s3 + $0x14] sm:$0xf]
  %v59 = vld [vmem:[%s3 + $0x18] sm:$0xf]
  %v60 = vld [vmem:[%s3 + $0x1c] sm:$0xf]
  %v61 = vld [vmem:[%s3 + $0x20] sm:$0xf]
  %v62 = vld [vmem:[%s3 + $0x24] sm:$0xf]
  %v63 = vld [vmem:[%s3 + $0x28] sm:$0xf]
  %v64 = vld [vmem:[%s3 + $0x2c] sm:$0xf]
  %v65 = vld [vmem:[%s3 + $0x30] sm:$0xf]
  %v66 = vld [vmem:[%s3 + $0x34] sm:$0xf]
  %v67 = vld [vmem:[%s3 + $0x38] sm:$0xf]
  %v68 = vld [vmem:[%s3 + $0x3c] sm:$0xf]
  %v71 = vunpack.c.l.b16 %v51
  %v72 = vunpack.c.l.b16 %v52
  %v73 = vpack.c.b16 %v72, %v71
  %v91 = vunpack.c.l.b16 %v53
  %v92 = vunpack.c.l.b16 %v54
  %v93 = vunpack.c.l.b16 %v55
  %v94 = vunpack.c.l.b16 %v56
  %v95 = vunpack.c.l.b16 %v57
  %v96 = vunpack.c.l.b16 %v58
  %v97 = vunpack.c.l.b16 %v59
  %v98 = vunpack.c.l.b16 %v60
  %v99 = vunpack.c.l.b16 %v61
  %v100 = vunpack.c.l.b16 %v62
  %v101 = vunpack.c.l.b16 %v63
  %v102 = vunpack.c.l.b16 %v64
  %v103 = vunpack.c.l.b16 %v65
  %v104 = vunpack.c.l.b16 %v66
  %v105 = vunpack.c.l.b16 %v67
  %v106 = vunpack.c.l.b16 %v68
  %v107 = vpack.c.b16 %v92, %v91
  %v108 = vpack.c.b16 %v94, %v93
  %v109 = vpack.c.b16 %v96, %v95
  %v110 = vpack.c.b16 %v98, %v97
  %v111 = vpack.c.b16 %v100, %v99
  %v112 = vpack.c.b16 %v102, %v101
  %v113 = vpack.c.b16 %v104, %v103
  %v114 = vpack.c.b16 %v106, %v105
  %123 = vmatprep.subr.bf16.mxu0 0
  %124 = vmatpush1.bf16.msra.mxu0 %v107
  %125 = vmatprep.subr.bf16.mxu0 0
  %126 = vmatpush1.bf16.msra.mxu0 %v108
  %127 = vmatprep.subr.bf16.mxu0 0
  %128 = vmatpush1.bf16.msra.mxu0 %v109
  %129 = vmatprep.subr.bf16.mxu0 0
  %130 = vmatpush1.bf16.msra.mxu0 %v110
  %131 = vmatprep.subr.bf16.mxu0 0
  %132 = vmatpush1.bf16.msra.mxu0 %v111
  %133 = vmatprep.subr.bf16.mxu0 0
  %134 = vmatpush1.bf16.msra.mxu0 %v112
  %135 = vmatprep.subr.bf16.mxu0 0
  %136 = vmatpush1.bf16.msra.mxu0 %v113
  %137 = vmatprep.subr.bf16.mxu0 0
  %138 = vmatpush1.bf16.msra.mxu0 %v114
  %139 = vmatprep.subr.bf16.mxu0 0
  %140 = vmatpush1.bf16.msra.mxu0 0
  %141 = vmatprep.subr.bf16.mxu0 0
  %142 = vmatpush1.bf16.msra.mxu0 0
  %143 = vmatprep.subr.bf16.mxu0 0
  %144 = vmatpush1.bf16.msra.mxu0 0
  %145 = vmatprep.subr.bf16.mxu0 0
  %146 = vmatpush1.bf16.msra.mxu0 0
  %147 = vmatprep.subr.bf16.mxu0 0
  %148 = vmatpush1.bf16.msra.mxu0 0
  %149 = vmatprep.subr.bf16.mxu0 0
  %150 = vmatpush1.bf16.msra.mxu0 0
  %151 = vmatprep.subr.bf16.mxu0 0
  %152 = vmatpush1.bf16.msra.mxu0 0
  %153 = vmatprep.subr.bf16.mxu0 0
  %154 = vmatpush1.bf16.msra.mxu0 0
  %155 = vmatprep.mubr.bf16.mxu0 0
  %156 = vmatmul.mubr.bf16.gmra.mrb[0].mxu0 %v73
  %v157 = vpop.f32.mrb[0].mxu0
  %v158 = vadd.f32 0.0, %v157
  %v159 = vpop.f32.mrb[0].mxu0
  %v160 = vpop.f32.mrb[0].mxu0
  %v161 = vadd.f32 0.0, %v160
  %v162 = vpop.f32.mrb[0].mxu0
  %163 = vdwg.mxu0
  %v166 = vunpack.c.l.b16 %v33
  %v167 = vunpack.c.l.b16 %v34
  %v168 = vpack.c.b16 %v167, %v166
  %v186 = vunpack.c.l.b16 %v35
  %v187 = vunpack.c.l.b16 %v36
  %v188 = vunpack.c.l.b16 %v37
  %v189 = vunpack.c.l.b16 %v38
  %v190 = vunpack.c.l.b16 %v39
  %v191 = vunpack.c.l.b16 %v40
  %v192 = vunpack.c.l.b16 %v41
  %v193 = vunpack.c.l.b16 %v42
  %v194 = vunpack.c.l.b16 %v43
  %v195 = vunpack.c.l.b16 %v44
  %v196 = vunpack.c.l.b16 %v45
  %v197 = vunpack.c.l.b16 %v46
  %v198 = vunpack.c.l.b16 %v47
  %v199 = vunpack.c.l.b16 %v48
  %v200 = vunpack.c.l.b16 %v49
  %v201 = vunpack.c.l.b16 %v50
  %v202 = vpack.c.b16 %v187, %v186
  %v203 = vpack.c.b16 %v189, %v188
  %v204 = vpack.c.b16 %v191, %v190
  %v205 = vpack.c.b16 %v193, %v192
  %v206 = vpack.c.b16 %v195, %v194
  %v207 = vpack.c.b16 %v197, %v196
  %v208 = vpack.c.b16 %v199, %v198
  %v209 = vpack.c.b16 %v201, %v200
  %218 = vmatprep.subr.bf16.mxu0 0
  %219 = vmatpush1.bf16.msra.mxu0 %v202
  %220 = vmatprep.subr.bf16.mxu0 0
  %221 = vmatpush1.bf16.msra.mxu0 %v203
  %222 = vmatprep.subr.bf16.mxu0 0
  %223 = vmatpush1.bf16.msra.mxu0 %v204
  %224 = vmatprep.subr.bf16.mxu0 0
  %225 = vmatpush1.bf16.msra.mxu0 %v205
  %226 = vmatprep.subr.bf16.mxu0 0
  %227 = vmatpush1.bf16.msra.mxu0 %v206
  %228 = vmatprep.subr.bf16.mxu0 0
  %229 = vmatpush1.bf16.msra.mxu0 %v207
  %230 = vmatprep.subr.bf16.mxu0 0
  %231 = vmatpush1.bf16.msra.mxu0 %v208
  %232 = vmatprep.subr.bf16.mxu0 0
  %233 = vmatpush1.bf16.msra.mxu0 %v209
  %234 = vmatprep.subr.bf16.mxu0 0
  %235 = vmatpush1.bf16.msra.mxu0 0
  %236 = vmatprep.subr.bf16.mxu0 0
  %237 = vmatpush1.bf16.msra.mxu0 0
  %238 = vmatprep.subr.bf16.mxu0 0
  %239 = vmatpush1.bf16.msra.mxu0 0
  %240 = vmatprep.subr.bf16.mxu0 0
  %241 = vmatpush1.bf16.msra.mxu0 0
  %242 = vmatprep.subr.bf16.mxu0 0
  %243 = vmatpush1.bf16.msra.mxu0 0
  %244 = vmatprep.subr.bf16.mxu0 0
  %245 = vmatpush1.bf16.msra.mxu0 0
  %246 = vmatprep.subr.bf16.mxu0 0
  %247 = vmatpush1.bf16.msra.mxu0 0
  %248 = vmatprep.subr.bf16.mxu0 0
  %249 = vmatpush1.bf16.msra.mxu0 0
  %250 = vmatprep.mubr.bf16.mxu0 0
  %251 = vmatmul.mubr.bf16.gmra.mrb[0].mxu0 %v168
  %v252 = vpop.f32.mrb[0].mxu0
  %v253 = vadd.f32 %v158, %v252
  %v254 = vpop.f32.mrb[0].mxu0
  %v255 = vpop.f32.mrb[0].mxu0
  %v256 = vadd.f32 %v161, %v255
  %v257 = vpop.f32.mrb[0].mxu0
  %258 = vdwg.mxu0
  %v259 = vld [vmem:[%s4] sm:$0x1]
  %v261 = vlaneseq
  %v262 = vshrl.u32 %v261, 7
  %v263 = vsub.s32 0, %v262
  %v264 = vrot.slane %v259, %v263
  %v266 = vadd.f32 %v253, %v264
  %v267 = vadd.f32 %v256, %v264
  %v268 = vmax.f32 %v266, 0.0
  %v269 = vmax.f32 %v267, 0.0
  %v270 = vpack.c.bf16 %v269, %v268
  %v271 = vld [vmem:[%s5] sm:$0xf]
  %v272 = vld [vmem:[%s5 + $0x4] sm:$0xf]
  %v273 = vld [vmem:[%s5 + $0x8] sm:$0xf]
  %v274 = vld [vmem:[%s5 + $0xc] sm:$0xf]
  %v275 = vld [vmem:[%s5 + $0x10] sm:$0xf]
  %v276 = vld [vmem:[%s5 + $0x14] sm:$0xf]
  %v277 = vld [vmem:[%s5 + $0x18] sm:$0xf]
  %v278 = vld [vmem:[%s5 + $0x1c] sm:$0xf]
  %v279 = vld [vmem:[%s5 + $0x20] sm:$0xf]
  %v280 = vld [vmem:[%s5 + $0x24] sm:$0xf]
  %v281 = vld [vmem:[%s5 + $0x28] sm:$0xf]
  %v282 = vld [vmem:[%s5 + $0x2c] sm:$0xf]
  %v283 = vld [vmem:[%s5 + $0x30] sm:$0xf]
  %v284 = vld [vmem:[%s5 + $0x34] sm:$0xf]
  %v285 = vld [vmem:[%s5 + $0x38] sm:$0xf]
  %v286 = vld [vmem:[%s5 + $0x3c] sm:$0xf]
  %v287 = vld [vmem:[%s6] sm:$0x1]
  %v289 = vlaneseq
  %v290 = vshrl.u32 %v289, 7
  %v291 = vsub.s32 0, %v290
  %v292 = vrot.slane %v287, %v291
  %v310 = vunpack.c.l.b16 %v271
  %v311 = vunpack.c.l.b16 %v272
  %v312 = vunpack.c.l.b16 %v273
  %v313 = vunpack.c.l.b16 %v274
  %v314 = vunpack.c.l.b16 %v275
  %v315 = vunpack.c.l.b16 %v276
  %v316 = vunpack.c.l.b16 %v277
  %v317 = vunpack.c.l.b16 %v278
  %v318 = vunpack.c.l.b16 %v279
  %v319 = vunpack.c.l.b16 %v280
  %v320 = vunpack.c.l.b16 %v281
  %v321 = vunpack.c.l.b16 %v282
  %v322 = vunpack.c.l.b16 %v283
  %v323 = vunpack.c.l.b16 %v284
  %v324 = vunpack.c.l.b16 %v285
  %v325 = vunpack.c.l.b16 %v286
  %v326 = vpack.c.b16 %v311, %v310
  %v327 = vpack.c.b16 %v313, %v312
  %v328 = vpack.c.b16 %v315, %v314
  %v329 = vpack.c.b16 %v317, %v316
  %v330 = vpack.c.b16 %v319, %v318
  %v331 = vpack.c.b16 %v321, %v320
  %v332 = vpack.c.b16 %v323, %v322
  %v333 = vpack.c.b16 %v325, %v324
  %342 = vmatprep.subr.bf16.mxu0 0
  %343 = vmatpush1.bf16.msra.mxu0 %v326
  %344 = vmatprep.subr.bf16.mxu0 0
  %345 = vmatpush1.bf16.msra.mxu0 %v327
  %346 = vmatprep.subr.bf16.mxu0 0
  %347 = vmatpush1.bf16.msra.mxu0 %v328
  %348 = vmatprep.subr.bf16.mxu0 0
  %349 = vmatpush1.bf16.msra.mxu0 %v329
  %350 = vmatprep.subr.bf16.mxu0 0
  %351 = vmatpush1.bf16.msra.mxu0 %v330
  %352 = vmatprep.subr.bf16.mxu0 0
  %353 = vmatpush1.bf16.msra.mxu0 %v331
  %354 = vmatprep.subr.bf16.mxu0 0
  %355 = vmatpush1.bf16.msra.mxu0 %v332
  %356 = vmatprep.subr.bf16.mxu0 0
  %357 = vmatpush1.bf16.msra.mxu0 %v333
  %358 = vmatprep.subr.bf16.mxu0 0
  %359 = vmatpush1.bf16.msra.mxu0 0
  %360 = vmatprep.subr.bf16.mxu0 0
  %361 = vmatpush1.bf16.msra.mxu0 0
  %362 = vmatprep.subr.bf16.mxu0 0
  %363 = vmatpush1.bf16.msra.mxu0 0
  %364 = vmatprep.subr.bf16.mxu0 0
  %365 = vmatpush1.bf16.msra.mxu0 0
  %366 = vmatprep.subr.bf16.mxu0 0
  %367 = vmatpush1.bf16.msra.mxu0 0
  %368 = vmatprep.subr.bf16.mxu0 0
  %369 = vmatpush1.bf16.msra.mxu0 0
  %370 = vmatprep.subr.bf16.mxu0 0
  %371 = vmatpush1.bf16.msra.mxu0 0
  %372 = vmatprep.subr.bf16.mxu0 0
  %373 = vmatpush1.bf16.msra.mxu0 0
  %374 = vmatprep.mubr.bf16.mxu0 0
  %375 = vmatmul.mubr.bf16.gmra.mrb[0].mxu0 %v270
  %v376 = vpop.f32.mrb[0].mxu0
  %v377 = vadd.f32 %v292, %v376
  %v378 = vpop.f32.mrb[0].mxu0
  %v379 = vpop.f32.mrb[0].mxu0
  %v380 = vadd.f32 %v292, %v379
  %v381 = vpop.f32.mrb[0].mxu0
  %382 = vdwg.mxu0
  %383 = vadd.xlane.f32.xlu0 %v377
  %v384 = vpop.xlane.xlu0 %383
  %385 = vadd.xlane.f32.xlu0 %v380
  %v386 = vpop.xlane.xlu0 %385
  %v387 = vmul.f32 %v377, %v377
  %v388 = vmul.f32 %v380, %v380
  %389 = vadd.xlane.f32.xlu0 %v387
  %v390 = vpop.xlane.xlu0 %389
  %391 = vadd.xlane.f32.xlu0 %v388
  %v392 = vpop.xlane.xlu0 %391
  %v393 = vrcp.pop 32.0
  %v394 = vmul.f32 %v384, %v393
  %v395 = vmul.f32 %v386, %v393
  %v396 = vmul.f32 %v390, %v393
  %v397 = vmul.f32 %v392, %v393
  %v398 = vmul.f32 %v394, %v394
  %v399 = vmul.f32 %v395, %v395
  %v400 = vsub.f32 %v396, %v398
  %v401 = vsub.f32 %v397, %v399
  %v402 = vmax.f32 %v400, 0.0
  %v403 = vmax.f32 %v401, 0.0
  %v404 = vsub.f32 %v377, %v394
  %v405 = vsub.f32 %v380, %v395
  %v406 = vadd.f32 %v402, 1e-05
  %v407 = vadd.f32 %v403, 1e-05
  %v408 = vrsqrt.pop %v406
  %v409 = vrsqrt.pop %v407
  %v410 = vmul.f32 %v404, %v408
  %v411 = vmul.f32 %v405, %v409
  %v412 = vld [vmem:[%s7] sm:$0x1]
  %v414 = vlaneseq
  %v415 = vshrl.u32 %v414, 7
  %v416 = vsub.s32 0, %v415
  %v417 = vrot.slane %v412, %v416
  %v419 = vmul.f32 %v410, %v417
  %v420 = vmul.f32 %v411, %v417
  %v421 = vld [vmem:[%s8] sm:$0x1]
  %v423 = vlaneseq
  %v424 = vshrl.u32 %v423, 7
  %v425 = vsub.s32 0, %v424
  %v426 = vrot.slane %v421, %v425
  %v428 = vadd.f32 %v419, %v426
  %v429 = vadd.f32 %v420, %v426
  %430 = vst [vmem:[%s9] sm:$0xff] %v428
  %431 = vst [vmem:[%s9 + $0x8] sm:$0xff] %v429
  // Predicated region
  $region38: #{_node_view_readout_impl.1} parent=0 // pred_check
    _
  $region39: #{_node_view_readout_impl.1} parent=0 // pred_check_branch
    %433 = sbr.rel (0) target = $region41
  $region40: #{_node_view_readout_impl.1} parent=0 // pred_region
    _
  $region41: #{_node_view_readout_impl.1} parent=0 // pred_fallthru
    _
  // Predicated region
  $region42: #{_node_view_readout_impl.1} parent=0 // pred_check
    _
  $region43: #{_node_view_readout_impl.1} parent=0 // pred_check_branch
    %435 = sbr.rel (0) target = $region45
  $region44: #{_node_view_readout_impl.1} parent=0 // pred_region
    _
  $region45: #{_node_view_readout_impl.1} parent=0 // pred_fallthru
    _

</llo_original>
